<compile_context>
chip_gen: v5e
topology: v5e:2x2
jax: 0.10.0
libtpu: 0.0.40
codegen_flags: <defaults>
</compile_context>

<pallas_src>
import functools

import jax
import jax.numpy as jnp
from jax import lax
from jax.experimental import pallas as pl
from jax.experimental.pallas import tpu as pltpu


def _round_up(x, m):
    return (x + m - 1) // m * m


def _decoder_kernel(x_ref, w_ref, sb_ref, o_ref, xpad_ref, *, C, H, W, K, M, Lpad):
    """Fused same-padded conv (C_in -> 1) + PReLU for one batch element.

    x_ref   : (1, C, H*W)    flat NCHW input block (VMEM)
    w_ref   : (C, K*K)       conv weights (VMEM, per-channel columns)
    sb_ref  : (2,)           [bias, alpha] (SMEM, scalar reads)
    o_ref   : (1, 1, H*W)    output block (VMEM, lane-dense)
    xpad_ref: (C, Lpad)      zero-margined flat image scratch (VMEM)
    """
    HW = H * W
    pad = K // 2
    tail = Lpad - M - HW

    # Zero only the (lane-aligned) margins; the interior is fully overwritten
    # below, so no full-scratch zero pass is needed.
    xpad_ref[:, pl.ds(0, M)] = jnp.zeros((C, M), jnp.float32)
    xpad_ref[:, pl.ds(M + HW, tail)] = jnp.zeros((C, tail), jnp.float32)
    # Lane-aligned interior copy (M and HW are multiples of 128).
    xpad_ref[:, pl.ds(M, HW)] = x_ref[0]

    bias = sb_ref[0]             # SMEM scalars -> free VPU splats
    alpha = sb_ref[1]

    # Output-column index for the wrap-around masks, generated in-kernel
    # (pure function of H, W, K): a handful of VPU ops, no input DMA.
    ow = lax.broadcasted_iota(jnp.int32, (1, HW), 1) % W

    acc = jnp.zeros((C, HW), dtype=jnp.float32)
    for kw in range(K):                       # static unrolled tap loops
        dw = kw - pad
        part = jnp.zeros((C, HW), dtype=jnp.float32)
        for kh in range(K):
            # Flattened tap (kh, kw): one lane-offset slice covering ALL
            # channels; row out-of-range taps fall into the zero margins.
            off = M + (kh - pad) * W + dw                  # static, >= 0
            patch = xpad_ref[:, pl.ds(off, HW)]            # (C, HW)
            wcol = w_ref[:, pl.ds(kh * K + kw, 1)]         # (C, 1) weight column
            part = part + wcol * patch                     # sublane-bcast FMA
        if dw == 0:
            acc = acc + part
        else:
            # Column wrap-around mask, applied once per kw to the (C, HW) partial.
            col = ow + dw
            mask = ((col >= 0) & (col < W)).astype(jnp.float32)   # (1, HW)
            acc = acc + part * mask

    # Single cross-sublane reduction over C, then bias + single-alpha PReLU.
    y = jnp.sum(acc, axis=0, keepdims=True) + bias         # (1, HW)
    o_ref[0] = jnp.where(y >= 0.0, y, alpha * y)


def decoder_forward(x_nchw, weight, bias, alpha, *, kernel_size):
    """Pallas Decoder forward.

    x_nchw : (N, C, H, W) float32
    weight : (1, C, K, K) float32   (PyTorch Conv2d layout)
    bias   : (1,) float32
    alpha  : scalar float32          (PReLU single parameter)
    returns: (N, 1, H, W) float32
    """
    N, C, H, W = x_nchw.shape
    K = kernel_size
    pad = K // 2
    HW = H * W

    # Left zero margin (>= pad*(W+1)) rounded up to a lane boundary so the
    # interior copy is aligned; total padded length also lane-aligned.
    M = max(_round_up(pad * (W + 1), 128), 128)
    Lpad = _round_up(M + HW + pad * (W + 1), 128)

    # NCHW consumed directly; flattening contiguous H,W is layout-free.
    x_flat = jnp.reshape(x_nchw, (N, C, HW)).astype(jnp.float32)

    # Per-channel weight columns: w_cn[c, kh*K + kw].
    w_cn = jnp.reshape(weight, (C, K * K)).astype(jnp.float32)

    sb = jnp.stack([jnp.reshape(bias, ()).astype(jnp.float32),
                    jnp.reshape(alpha, ()).astype(jnp.float32)])   # (2,)

    kernel = functools.partial(_decoder_kernel, C=C, H=H, W=W, K=K, M=M, Lpad=Lpad)

    out = pl.pallas_call(
        kernel,
        out_shape=jax.ShapeDtypeStruct((N, 1, HW), jnp.float32),
        grid_spec=pltpu.PrefetchScalarGridSpec(
            num_scalar_prefetch=0,
            grid=(N,),
            in_specs=[
                pl.BlockSpec((1, C, HW), lambda n: (n, 0, 0)),
                pl.BlockSpec((C, K * K), lambda n: (0, 0)),
                pl.BlockSpec(memory_space=pltpu.MemorySpace.SMEM),
            ],
            out_specs=pl.BlockSpec((1, 1, HW), lambda n: (n, 0, 0)),
            scratch_shapes=[pltpu.VMEM((C, Lpad), jnp.float32)],
        ),
        compiler_params=pltpu.CompilerParams(
            dimension_semantics=("parallel",)),
    )(x_flat, w_cn, sb)

    return jnp.reshape(out, (N, 1, H, W))


def _reference(x_nchw, weight, bias, alpha):
    """Pure-JAX reference (lax conv) for correctness check."""
    y = lax.conv_general_dilated(
        x_nchw, weight,
        window_strides=(1, 1),
        padding="SAME",
        dimension_numbers=("NCHW", "OIHW", "NCHW"),
    ) + bias[None, :, None, None]
    return jnp.where(y >= 0.0, y, alpha * y)


if __name__ == "__main__":
    # setup['encoder']['n_hidden_fusion'] = 4, setup['decoder']['kernel_size'] = 3
    N, C, H, W = 2, 4, 16, 16
    K = 3

    key = jax.random.PRNGKey(0)
    k_x, k_w, k_b = jax.random.split(key, 3)
    x = jax.random.normal(k_x, (N, C, H, W), dtype=jnp.float32)
    weight = 0.1 * jax.random.normal(k_w, (1, C, K, K), dtype=jnp.float32)
    bias = 0.05 * jax.random.normal(k_b, (1,), dtype=jnp.float32)
    alpha = jnp.float32(0.25)  # PReLU default init

    out = decoder_forward(x, weight, bias, alpha, kernel_size=K)
    out = jax.block_until_ready(out)

    ref = _reference(x, weight, bias, alpha)
    assert out.shape == (N, 1, H, W), out.shape
    assert jnp.allclose(out, ref, atol=1e-5, rtol=1e-5), "mismatch vs reference"

    print("KERNEL_OK")
</pallas_src>

<mosaic_0001>
module attributes {stable_mosaic.version = 11 : i64} {
  func.func @_decoder_kernel(%arg0: i32, %arg1: memref<1x4x256xf32, #tpu.memory_space<vmem>>, %arg2: memref<4x9xf32, #tpu.memory_space<vmem>>, %arg3: memref<2xf32, #tpu.memory_space<smem>>, %arg4: memref<1x1x256xf32, #tpu.memory_space<vmem>>, %arg5: memref<4x512xf32, #tpu.memory_space<vmem>>) attributes {dimension_semantics = [#tpu.dimension_semantics<parallel>], iteration_bounds = array<i64: 2>, scalar_prefetch = 0 : i64, scratch_operands = 1 : i64, tpu.core_type = #tpu.core_type<tc>, window_params = [{transform_indices = @transform_0, window_bounds = array<i64: 1, 4, 256>}, {pipeline_mode = #tpu.pipeline_mode<synchronous>, transform_indices = @transform_1, window_bounds = array<i64: 4, 9>}, {transform_indices = @transform_2, window_bounds = array<i64: 2>}, {transform_indices = @transform_3, window_bounds = array<i64: 1, 1, 256>}]} {
    %cst = arith.constant 0.000000e+00 : f32
    %0 = vector.broadcast %cst : f32 to vector<4x128xf32>
    %c0 = arith.constant 0 : index
    %c0_0 = arith.constant 0 : index
    %1 = vector.load %arg5[%c0, %c0_0] : memref<4x512xf32, #tpu.memory_space<vmem>>, vector<4x128xf32>
    tpu.vector_store %arg5[%c0, %c0_0], %0 {strides = array<i32>} : memref<4x512xf32, #tpu.memory_space<vmem>>, vector<4x128xf32>,
    %cst_1 = arith.constant 0.000000e+00 : f32
    %2 = vector.broadcast %cst_1 : f32 to vector<4x128xf32>
    %c0_2 = arith.constant 0 : index
    %c384 = arith.constant 384 : index
    %3 = vector.load %arg5[%c0_2, %c384] : memref<4x512xf32, #tpu.memory_space<vmem>>, vector<4x128xf32>
    tpu.vector_store %arg5[%c0_2, %c384], %2 {strides = array<i32>} : memref<4x512xf32, #tpu.memory_space<vmem>>, vector<4x128xf32>,
    %c0_3 = arith.constant 0 : index
    %c0_4 = arith.constant 0 : index
    %c0_5 = arith.constant 0 : index
    %4 = vector.load %arg1[%c0_3, %c0_4, %c0_5] : memref<1x4x256xf32, #tpu.memory_space<vmem>>, vector<1x4x256xf32>
    %5 = vector.shape_cast %4 : vector<1x4x256xf32> to vector<4x256xf32>
    %c0_6 = arith.constant 0 : index
    %c128 = arith.constant 128 : index
    %6 = vector.load %arg5[%c0_6, %c128] : memref<4x512xf32, #tpu.memory_space<vmem>>, vector<4x256xf32>
    tpu.vector_store %arg5[%c0_6, %c128], %5 {strides = array<i32>} : memref<4x512xf32, #tpu.memory_space<vmem>>, vector<4x256xf32>,
    %c0_7 = arith.constant 0 : index
    %7 = memref.load %arg3[%c0_7] : memref<2xf32, #tpu.memory_space<smem>>
    %c1 = arith.constant 1 : index
    %8 = memref.load %arg3[%c1] : memref<2xf32, #tpu.memory_space<smem>>
    %9 = tpu.iota {dimensions = array<i32: 1>} : vector<1x256xi32>
    %c16_i32 = arith.constant 16 : i32
    %c0_i32 = arith.constant 0 : i32
    %10 = arith.cmpi eq, %c16_i32, %c0_i32 : i32
    %c1_i32 = arith.constant 1 : i32
    %11 = arith.select %10, %c1_i32, %c16_i32 : i32
    %12 = vector.broadcast %11 : i32 to vector<1x256xi32>
    %13 = arith.remsi %9, %12 : vector<1x256xi32>
    %c0_i32_8 = arith.constant 0 : i32
    %14 = vector.broadcast %c0_i32_8 : i32 to vector<1x256xi32>
    %15 = arith.cmpi ne, %13, %14 : vector<1x256xi32>
    %c0_i32_9 = arith.constant 0 : i32
    %16 = vector.broadcast %c0_i32_9 : i32 to vector<1x256xi32>
    %17 = arith.cmpi slt, %13, %16 : vector<1x256xi32>
    %c0_i32_10 = arith.constant 0 : i32
    %18 = arith.cmpi slt, %11, %c0_i32_10 : i32
    %19 = vector.broadcast %18 : i1 to vector<1x256xi1>
    %20 = vector.broadcast %19 : vector<1x256xi1> to vector<1x256xi1>
    %21 = arith.xori %17, %20 : vector<1x256xi1>
    %22 = arith.andi %21, %15 : vector<1x256xi1>
    %23 = vector.broadcast %11 : i32 to vector<1x256xi32>
    %24 = arith.addi %13, %23 : vector<1x256xi32>
    %25 = arith.select %22, %24, %13 : vector<1x256xi1>, vector<1x256xi32>
    %cst_11 = arith.constant 0.000000e+00 : f32
    %26 = vector.broadcast %cst_11 : f32 to vector<4x256xf32>
    %cst_12 = arith.constant 0.000000e+00 : f32
    %27 = vector.broadcast %cst_12 : f32 to vector<4x256xf32>
    %c0_13 = arith.constant 0 : index
    %c111 = arith.constant 111 : index
    %28 = vector.load %arg5[%c0_13, %c111] : memref<4x512xf32, #tpu.memory_space<vmem>>, vector<4x256xf32>
    %c0_14 = arith.constant 0 : index
    %c0_15 = arith.constant 0 : index
    %29 = vector.load %arg2[%c0_14, %c0_15] : memref<4x9xf32, #tpu.memory_space<vmem>>, vector<4x1xf32>
    %30 = vector.broadcast %29 : vector<4x1xf32> to vector<4x256xf32>
    %31 = arith.mulf %30, %28 : vector<4x256xf32>
    %32 = arith.addf %27, %31 : vector<4x256xf32>
    %c0_16 = arith.constant 0 : index
    %c127 = arith.constant 127 : index
    %33 = vector.load %arg5[%c0_16, %c127] : memref<4x512xf32, #tpu.memory_space<vmem>>, vector<4x256xf32>
    %c0_17 = arith.constant 0 : index
    %c3 = arith.constant 3 : index
    %34 = vector.load %arg2[%c0_17, %c3] : memref<4x9xf32, #tpu.memory_space<vmem>>, vector<4x1xf32>
    %35 = vector.broadcast %34 : vector<4x1xf32> to vector<4x256xf32>
    %36 = arith.mulf %35, %33 : vector<4x256xf32>
    %37 = arith.addf %32, %36 : vector<4x256xf32>
    %c0_18 = arith.constant 0 : index
    %c143 = arith.constant 143 : index
    %38 = vector.load %arg5[%c0_18, %c143] : memref<4x512xf32, #tpu.memory_space<vmem>>, vector<4x256xf32>
    %c0_19 = arith.constant 0 : index
    %c6 = arith.constant 6 : index
    %39 = vector.load %arg2[%c0_19, %c6] : memref<4x9xf32, #tpu.memory_space<vmem>>, vector<4x1xf32>
    %40 = vector.broadcast %39 : vector<4x1xf32> to vector<4x256xf32>
    %41 = arith.mulf %40, %38 : vector<4x256xf32>
    %42 = arith.addf %37, %41 : vector<4x256xf32>
    %c-1_i32 = arith.constant -1 : i32
    %43 = vector.broadcast %c-1_i32 : i32 to vector<1x256xi32>
    %44 = arith.addi %25, %43 : vector<1x256xi32>
    %c0_i32_20 = arith.constant 0 : i32
    %45 = vector.broadcast %c0_i32_20 : i32 to vector<1x256xi32>
    %46 = arith.cmpi sge, %44, %45 : vector<1x256xi32>
    %c16_i32_21 = arith.constant 16 : i32
    %47 = vector.broadcast %c16_i32_21 : i32 to vector<1x256xi32>
    %48 = arith.cmpi slt, %44, %47 : vector<1x256xi32>
    %49 = arith.andi %46, %48 : vector<1x256xi1>
    %50 = arith.extui %49 : vector<1x256xi1> to vector<1x256xi32>
    %51 = arith.sitofp %50 : vector<1x256xi32> to vector<1x256xf32>
    %52 = vector.broadcast %51 : vector<1x256xf32> to vector<4x256xf32>
    %53 = arith.mulf %42, %52 : vector<4x256xf32>
    %54 = arith.addf %26, %53 : vector<4x256xf32>
    %cst_22 = arith.constant 0.000000e+00 : f32
    %55 = vector.broadcast %cst_22 : f32 to vector<4x256xf32>
    %c0_23 = arith.constant 0 : index
    %c112 = arith.constant 112 : index
    %56 = vector.load %arg5[%c0_23, %c112] : memref<4x512xf32, #tpu.memory_space<vmem>>, vector<4x256xf32>
    %c0_24 = arith.constant 0 : index
    %c1_25 = arith.constant 1 : index
    %57 = vector.load %arg2[%c0_24, %c1_25] : memref<4x9xf32, #tpu.memory_space<vmem>>, vector<4x1xf32>
    %58 = vector.broadcast %57 : vector<4x1xf32> to vector<4x256xf32>
    %59 = arith.mulf %58, %56 : vector<4x256xf32>
    %60 = arith.addf %55, %59 : vector<4x256xf32>
    %c0_26 = arith.constant 0 : index
    %c128_27 = arith.constant 128 : index
    %61 = vector.load %arg5[%c0_26, %c128_27] : memref<4x512xf32, #tpu.memory_space<vmem>>, vector<4x256xf32>
    %c0_28 = arith.constant 0 : index
    %c4 = arith.constant 4 : index
    %62 = vector.load %arg2[%c0_28, %c4] : memref<4x9xf32, #tpu.memory_space<vmem>>, vector<4x1xf32>
    %63 = vector.broadcast %62 : vector<4x1xf32> to vector<4x256xf32>
    %64 = arith.mulf %63, %61 : vector<4x256xf32>
    %65 = arith.addf %60, %64 : vector<4x256xf32>
    %c0_29 = arith.constant 0 : index
    %c144 = arith.constant 144 : index
    %66 = vector.load %arg5[%c0_29, %c144] : memref<4x512xf32, #tpu.memory_space<vmem>>, vector<4x256xf32>
    %c0_30 = arith.constant 0 : index
    %c7 = arith.constant 7 : index
    %67 = vector.load %arg2[%c0_30, %c7] : memref<4x9xf32, #tpu.memory_space<vmem>>, vector<4x1xf32>
    %68 = vector.broadcast %67 : vector<4x1xf32> to vector<4x256xf32>
    %69 = arith.mulf %68, %66 : vector<4x256xf32>
    %70 = arith.addf %65, %69 : vector<4x256xf32>
    %71 = arith.addf %54, %70 : vector<4x256xf32>
    %cst_31 = arith.constant 0.000000e+00 : f32
    %72 = vector.broadcast %cst_31 : f32 to vector<4x256xf32>
    %c0_32 = arith.constant 0 : index
    %c113 = arith.constant 113 : index
    %73 = vector.load %arg5[%c0_32, %c113] : memref<4x512xf32, #tpu.memory_space<vmem>>, vector<4x256xf32>
    %c0_33 = arith.constant 0 : index
    %c2 = arith.constant 2 : index
    %74 = vector.load %arg2[%c0_33, %c2] : memref<4x9xf32, #tpu.memory_space<vmem>>, vector<4x1xf32>
    %75 = vector.broadcast %74 : vector<4x1xf32> to vector<4x256xf32>
    %76 = arith.mulf %75, %73 : vector<4x256xf32>
    %77 = arith.addf %72, %76 : vector<4x256xf32>
    %c0_34 = arith.constant 0 : index
    %c129 = arith.constant 129 : index
    %78 = vector.load %arg5[%c0_34, %c129] : memref<4x512xf32, #tpu.memory_space<vmem>>, vector<4x256xf32>
    %c0_35 = arith.constant 0 : index
    %c5 = arith.constant 5 : index
    %79 = vector.load %arg2[%c0_35, %c5] : memref<4x9xf32, #tpu.memory_space<vmem>>, vector<4x1xf32>
    %80 = vector.broadcast %79 : vector<4x1xf32> to vector<4x256xf32>
    %81 = arith.mulf %80, %78 : vector<4x256xf32>
    %82 = arith.addf %77, %81 : vector<4x256xf32>
    %c0_36 = arith.constant 0 : index
    %c145 = arith.constant 145 : index
    %83 = vector.load %arg5[%c0_36, %c145] : memref<4x512xf32, #tpu.memory_space<vmem>>, vector<4x256xf32>
    %c0_37 = arith.constant 0 : index
    %c8 = arith.constant 8 : index
    %84 = vector.load %arg2[%c0_37, %c8] : memref<4x9xf32, #tpu.memory_space<vmem>>, vector<4x1xf32>
    %85 = vector.broadcast %84 : vector<4x1xf32> to vector<4x256xf32>
    %86 = arith.mulf %85, %83 : vector<4x256xf32>
    %87 = arith.addf %82, %86 : vector<4x256xf32>
    %c1_i32_38 = arith.constant 1 : i32
    %88 = vector.broadcast %c1_i32_38 : i32 to vector<1x256xi32>
    %89 = arith.addi %25, %88 : vector<1x256xi32>
    %c0_i32_39 = arith.constant 0 : i32
    %90 = vector.broadcast %c0_i32_39 : i32 to vector<1x256xi32>
    %91 = arith.cmpi sge, %89, %90 : vector<1x256xi32>
    %c16_i32_40 = arith.constant 16 : i32
    %92 = vector.broadcast %c16_i32_40 : i32 to vector<1x256xi32>
    %93 = arith.cmpi slt, %89, %92 : vector<1x256xi32>
    %94 = arith.andi %91, %93 : vector<1x256xi1>
    %95 = arith.extui %94 : vector<1x256xi1> to vector<1x256xi32>
    %96 = arith.sitofp %95 : vector<1x256xi32> to vector<1x256xf32>
    %97 = vector.broadcast %96 : vector<1x256xf32> to vector<4x256xf32>
    %98 = arith.mulf %87, %97 : vector<4x256xf32>
    %99 = arith.addf %71, %98 : vector<4x256xf32>
    %cst_41 = arith.constant dense<0.000000e+00> : vector<256xf32>
    %100 = vector.multi_reduction <add>, %99, %cst_41 [0] : vector<4x256xf32> to vector<256xf32>
    %101 = vector.shape_cast %100 : vector<256xf32> to vector<1x256xf32>
    %102 = vector.broadcast %7 : f32 to vector<1x256xf32>
    %103 = arith.addf %101, %102 : vector<1x256xf32>
    %cst_42 = arith.constant 0.000000e+00 : f32
    %104 = vector.broadcast %cst_42 : f32 to vector<1x256xf32>
    %105 = arith.cmpf oge, %103, %104 : vector<1x256xf32>
    %106 = vector.broadcast %8 : f32 to vector<1x256xf32>
    %107 = arith.mulf %106, %103 : vector<1x256xf32>
    %108 = arith.select %105, %103, %107 : vector<1x256xi1>, vector<1x256xf32>
    %c0_43 = arith.constant 0 : index
    %c0_44 = arith.constant 0 : index
    %c0_45 = arith.constant 0 : index
    %109 = vector.load %arg4[%c0_43, %c0_44, %c0_45] : memref<1x1x256xf32, #tpu.memory_space<vmem>>, vector<1x1x256xf32>
    %110 = vector.shape_cast %109 : vector<1x1x256xf32> to vector<1x256xf32>
    %111 = vector.shape_cast %108 : vector<1x256xf32> to vector<1x1x256xf32>
    tpu.vector_store %arg4[%c0_43, %c0_44, %c0_45], %111 {strides = array<i32>} : memref<1x1x256xf32, #tpu.memory_space<vmem>>, vector<1x1x256xf32>,
    return
  }
  func.func @transform_0(%arg0: i32) -> (i32, i32, i32) {
    %c0_i32 = arith.constant 0 : i32
    %c0_i32_0 = arith.constant 0 : i32
    %c0_i32_1 = arith.constant 0 : i32
    return %arg0, %c0_i32, %c0_i32_0 : i32, i32, i32
  }
  func.func @transform_1(%arg0: i32) -> (i32, i32) {
    %c0_i32 = arith.constant 0 : i32
    %c0_i32_0 = arith.constant 0 : i32
    %c0_i32_1 = arith.constant 0 : i32
    return %c0_i32, %c0_i32_0 : i32, i32
  }
  func.func @transform_2(%arg0: i32) -> i32 {
    %c0_i32 = arith.constant 0 : i32
    %c0_i32_0 = arith.constant 0 : i32
    return %c0_i32 : i32
  }
  func.func @transform_3(%arg0: i32) -> (i32, i32, i32) {
    %c0_i32 = arith.constant 0 : i32
    %c0_i32_0 = arith.constant 0 : i32
    %c0_i32_1 = arith.constant 0 : i32
    return %arg0, %c0_i32, %c0_i32_0 : i32, i32, i32
  }
}

</mosaic_0001>

<llo_original>
// kernel: tpu_custom_call.1
$region0: #{tpu_custom_call.1}
  #allocation0 [shape = 'u32[]', space=smem, size = 0x4, offset = 0x4, fixed_abs, tag = 'smem constant byte address 0x4 - core index']
  #allocation1 [shape = 'u32[72,128]{1,0:T(1,128)}', space=vmem, size = 0x9000, scoped, tag = 'internal scratch']
  #allocation2 [shape = 'f32[4,512]{1,0:T(4,128)}', space=vmem, size = 0x2000, scoped, tag = 'scratch operand']
  %s0 = inlined_call_operand.hbm [shape: f32[2,4,256], index: 0, kind: input, shape index: {}]
  %s1 = inlined_call_operand.hbm [shape: f32[4,9], index: 1, kind: input, shape index: {}]
  %s2 = inlined_call_operand.vmem [shape: f32[2], index: 2, kind: input, shape index: {}]
  %s3 = inlined_call_operand.hbm [shape: f32[2,1,256], index: 3, kind: output, shape index: {}]
  %s4 = sld [smem:[#allocation0]]
  $region57: #{tpu_custom_call.1} parent=0
    _
  %s6 = ssub.s32 1, %s4
  %s7 = scalar_select 0, %s6, %s4
  $region1: #{tpu_custom_call.1} parent=0
    #allocation3 [shape = 'u8[8192]{0}', space=vmem, size = 0x2000, scoped, tag = 'input window, operand 0']
    #allocation4 [shape = 's32[2]{0}', space=sflag, size = 0x8, scoped, tag = 'scoped memory for tpu_custom_call.1']
    #allocation5 [shape = 's32[2]{0}', space=sflag, size = 0x8, scoped, tag = 'scoped memory for tpu_custom_call.1']
    #allocation6 [shape = 's32[2]{0}', space=sflag, size = 0x8, scoped, tag = 'scoped memory for tpu_custom_call.1']
    #allocation7 [shape = 'u8[2048]{0}', space=vmem, size = 0x800, scoped, tag = 'input window, operand 1, single buffered']
    #allocation8 [shape = 's32[1]{0}', space=sflag, size = 0x4, scoped, tag = 'scoped memory for tpu_custom_call.1']
    #allocation9 [shape = 'u8[512]{0}', space=smem, size = 0x200, scoped, tag = 'input window, operand 2, single buffered']
    #allocation10 [shape = 'u8[2048]{0}', space=vmem, size = 0x800, scoped, tag = 'output window, operand 0']
    %8 = vsyncpa [#allocation4], 0
    %s9 = scalar_lea.sflag [#allocation4], 1
    %10 = vsyncpa %s9, 0
    %11 = vsyncpa [#allocation8], 0
    %12 = vsyncpa [#allocation6], 0
    %13 = vsyncpa [#allocation5], 0
    %s14 = scalar_lea.sflag [#allocation5], 1
    %15 = vsyncpa %s14, 0
    loop: start=0, step=1, limit=4
    $region2: #{tpu_custom_call.1} parent=1 // loop_pre_header
      _
    $region3: #{tpu_custom_call.1} parent=1 // loop_header
      %s17 = sphi 0, %s21
      %p18 = scmp.ge.s32.totalorder %s17, 4
      %s27 = sphi 0, %s29
      %s30 = sphi 0, %s27
      %s31 = sphi 0, %s30
      %s47 = sphi 0, %s31
      %s51 = sphi 0, %s51
      %s53 = sphi 0, %s51
      %s54 = sphi 0, %s53
      %s68 = sphi 0, %s54
      %s72 = sphi 0, %s72
      %s74 = sphi 0, %s72
      %s75 = sphi 0, %s74
      %s89 = sphi 0, %s75
      %s95 = sphi 0, %s97
      %s98 = sphi 0, %s95
      %s99 = sphi 0, %s98
      %s115 = sphi 0, %s99
    $region4: #{tpu_custom_call.1} parent=1 // loop_header_branch
      %20 = sbr.rel (%p18) target = $region8
    $region5: #{tpu_custom_call.1} parent=1 // loop_body
      %s22 = ssub.s32 %s17, 1
      %s23 = ssub.s32 %s17, 2
      %s24 = sadd.s32 %s17, 1
      %s25 = ssub.s32 %s17, %s24
      %p26 = scmp.eq.s32.totalorder %s25, 0
      %s28 = sadd.s32 %s27, 1
      %s29 = scalar_select %p26, %s27, %s28
      %p32 = pneg %p26
      %p33 = scmp.eq.s32.totalorder %s17, 1
      %p34 = por %p32, %p33
      %p35 = scmp.ne.s32.totalorder %s27, %s30
      %p36 = scmp.eq.s32.totalorder %s17, 0
      %p37 = por %p35, %p36
      %p38 = scmp.ne.s32.totalorder %s27, %s30
      %p39 = scmp.eq.s32.totalorder %s22, 1
      %p40 = por %p38, %p39
      %p41 = scmp.ne.s32.totalorder %s30, %s31
      %p42 = scmp.eq.s32.totalorder %s22, 0
      %p43 = por %p41, %p42
      %p44 = scmp.ne.s32.totalorder %s30, %s31
      %p45 = scmp.eq.s32.totalorder %s23, 1
      %p46 = por %p44, %p45
      %p48 = scmp.ne.s32.totalorder %s31, %s47
      %p49 = scmp.eq.s32.totalorder %s23, 0
      %p50 = por %p48, %p49
      %s52 = sadd.s32 %s51, 1
      %p55 = scmp.eq.s32.totalorder %s17, 1
      %p56 = scmp.ne.s32.totalorder %s51, %s53
      %p57 = scmp.eq.s32.totalorder %s17, 0
      %p58 = por %p56, %p57
      %p59 = scmp.ne.s32.totalorder %s51, %s53
      %p60 = scmp.eq.s32.totalorder %s22, 1
      %p61 = por %p59, %p60
      %p62 = scmp.ne.s32.totalorder %s53, %s54
      %p63 = scmp.eq.s32.totalorder %s22, 0
      %p64 = por %p62, %p63
      %p65 = scmp.ne.s32.totalorder %s53, %s54
      %p66 = scmp.eq.s32.totalorder %s23, 1
      %p67 = por %p65, %p66
      %p69 = scmp.ne.s32.totalorder %s54, %s68
      %p70 = scmp.eq.s32.totalorder %s23, 0
      %p71 = por %p69, %p70
      %s73 = sadd.s32 %s72, 1
      %p76 = scmp.eq.s32.totalorder %s17, 1
      %p77 = scmp.ne.s32.totalorder %s72, %s74
      %p78 = scmp.eq.s32.totalorder %s17, 0
      %p79 = por %p77, %p78
      %p80 = scmp.ne.s32.totalorder %s72, %s74
      %p81 = scmp.eq.s32.totalorder %s22, 1
      %p82 = por %p80, %p81
      %p83 = scmp.ne.s32.totalorder %s74, %s75
      %p84 = scmp.eq.s32.totalorder %s22, 0
      %p85 = por %p83, %p84
      %p86 = scmp.ne.s32.totalorder %s74, %s75
      %p87 = scmp.eq.s32.totalorder %s23, 1
      %p88 = por %p86, %p87
      %p90 = scmp.ne.s32.totalorder %s75, %s89
      %p91 = scmp.eq.s32.totalorder %s23, 0
      %p92 = por %p90, %p91
      %s93 = ssub.s32 %s17, %s24
      %p94 = scmp.eq.s32.totalorder %s93, 0
      %s96 = sadd.s32 %s95, 1
      %s97 = scalar_select %p94, %s95, %s96
      %p100 = pneg %p94
      %p101 = scmp.eq.s32.totalorder %s17, 1
      %p102 = por %p100, %p101
      %p103 = scmp.ne.s32.totalorder %s95, %s98
      %p104 = scmp.eq.s32.totalorder %s17, 0
      %p105 = por %p103, %p104
      %p106 = scmp.ne.s32.totalorder %s95, %s98
      %p107 = scmp.eq.s32.totalorder %s22, 1
      %p108 = por %p106, %p107
      %p109 = scmp.ne.s32.totalorder %s98, %s99
      %p110 = scmp.eq.s32.totalorder %s22, 0
      %p111 = por %p109, %p110
      %p112 = scmp.ne.s32.totalorder %s98, %s99
      %p113 = scmp.eq.s32.totalorder %s23, 1
      %p114 = por %p112, %p113
      %p116 = scmp.ne.s32.totalorder %s99, %s115
      %p117 = scmp.eq.s32.totalorder %s23, 0
      %p118 = por %p116, %p117
      %p119 = scmp.le.s32.totalorder 1, %s17
      %p120 = scmp.lt.s32.totalorder %s17, 3
      %p121 = pnand %p119, %p120
      %p122 = pneg %p121
      // Predicated region
      $region9: #{tpu_custom_call.1} parent=5 // pred_check
        _
      $region10: #{tpu_custom_call.1} parent=5 // pred_check_branch
        %124 = sbr.rel (%p121) target = $region12
      $region11: #{tpu_custom_call.1} parent=5 // pred_region
        %s125 = ssub.s32 %s17, 1
        // Predicated region
        $region13: #{tpu_custom_call.1} parent=11 // pred_check
          %p126 = pneg %p64
        $region14: #{tpu_custom_call.1} parent=11 // pred_check_branch
          %128 = sbr.rel (%p126) target = $region16
        $region15: #{tpu_custom_call.1} parent=11 // pred_region
          %130 = vsyncadd [#allocation8], 0
          %s132 = sshll.u32 %s1, 4
          %s133 = int_to_ptr.hbm [resolvable:$true] %s132
          %s134 = sshll.u32 [#allocation7], 4
          %s135 = int_to_ptr.vmem [resolvable:$true] %s134
          %137 = dma.hbm_to_vmem [thread:$0]  %s133, 64, %s135, [#allocation8]
        $region16: #{tpu_custom_call.1} parent=11 // pred_fallthru
          _
        // Predicated region
        $region17: #{tpu_custom_call.1} parent=11 // pred_check
          %p138 = pneg %p85
        $region18: #{tpu_custom_call.1} parent=11 // pred_check_branch
          %140 = sbr.rel (%p138) target = $region20
        $region19: #{tpu_custom_call.1} parent=11 // pred_region
          %142 = vsyncadd [#allocation6], 0
          %s144 = sshll.u32 %s2, 4
          %s145 = int_to_ptr.vmem [resolvable:$true] %s144
          %147 = dma.vmem_to_smem %s145, 16, [#allocation9], [#allocation6]
        $region20: #{tpu_custom_call.1} parent=11 // pred_fallthru
          _
      $region12: #{tpu_custom_call.1} parent=5 // pred_fallthru
        _
      %p148 = scmp.lt.s32.totalorder %s17, 2
      // Predicated region
      $region21: #{tpu_custom_call.1} parent=5 // pred_check
        %p149 = pneg %p148
      $region22: #{tpu_custom_call.1} parent=5 // pred_check_branch
        %151 = sbr.rel (%p149) target = $region24
      $region23: #{tpu_custom_call.1} parent=5 // pred_region
        // Predicated region
        $region25: #{tpu_custom_call.1} parent=23 // pred_check
          %p152 = pneg %p37
        $region26: #{tpu_custom_call.1} parent=23 // pred_check_branch
          %154 = sbr.rel (%p152) target = $region28
        $region27: #{tpu_custom_call.1} parent=23 // pred_region
          %s155 = sand.u32 %s27, 1
          %s156 = scalar_lea.sflag [#allocation4], %s155
          %s157 = sand.u32 %s27, 1
          %s158 = smul.addr %s157, 8
          %s159 = scalar_lea.vmem [#allocation3], %s158
          %161 = vsyncadd %s156, 0
          %s162 = smul.addr %s17, 2
          %s163 = smul.addr %s162, 4
          %s164 = scalar_lea.hbm %s0, %s163
          %s166 = sshll.u32 %s164, 4
          %s167 = int_to_ptr.hbm [resolvable:$true] %s166
          %s168 = sshll.u32 %s159, 4
          %s169 = int_to_ptr.vmem [resolvable:$true] %s168
          %171 = dma.hbm_to_vmem [thread:$0]  %s167, 128, %s169, %s156
        $region28: #{tpu_custom_call.1} parent=23 // pred_fallthru
          _
      $region24: #{tpu_custom_call.1} parent=5 // pred_fallthru
        _
      %p172 = scmp.le.s32.totalorder 1, %s17
      %p173 = scmp.lt.s32.totalorder %s17, 3
      %p174 = pnand %p172, %p173
      %p175 = pneg %p174
      // Predicated region
      $region29: #{tpu_custom_call.1} parent=5 // pred_check
        _
      $region30: #{tpu_custom_call.1} parent=5 // pred_check_branch
        %177 = sbr.rel (%p174) target = $region32
      $region31: #{tpu_custom_call.1} parent=5 // pred_region
        %s178 = ssub.s32 %s17, 1
        %s179 = sand.u32 %s30, 1
        %s180 = scalar_lea.sflag [#allocation4], %s179
        %s181 = sand.u32 %s30, 1
        %s182 = smul.addr %s181, 8
        %s183 = scalar_lea.vmem [#allocation3], %s182
        // Predicated region
        $region33: #{tpu_custom_call.1} parent=31 // pred_check
          %p184 = pneg %p43
        $region34: #{tpu_custom_call.1} parent=31 // pred_check_branch
          %186 = sbr.rel (%p184) target = $region36
        $region35: #{tpu_custom_call.1} parent=31 // pred_region
          %188 = dma.done %s180, 128
        $region36: #{tpu_custom_call.1} parent=31 // pred_fallthru
          _
        // Predicated region
        $region37: #{tpu_custom_call.1} parent=31 // pred_check
          %p189 = pneg %p64
        $region38: #{tpu_custom_call.1} parent=31 // pred_check_branch
          %191 = sbr.rel (%p189) target = $region40
        $region39: #{tpu_custom_call.1} parent=31 // pred_region
          %193 = dma.done [#allocation8], 64
        $region40: #{tpu_custom_call.1} parent=31 // pred_fallthru
          _
        // Predicated region
        $region41: #{tpu_custom_call.1} parent=31 // pred_check
          %p194 = pneg %p85
        $region42: #{tpu_custom_call.1} parent=31 // pred_check_branch
          %196 = sbr.rel (%p194) target = $region44
        $region43: #{tpu_custom_call.1} parent=31 // pred_region
          %198 = dma.done [#allocation6], 16
        $region44: #{tpu_custom_call.1} parent=31 // pred_fallthru
          _
        %199 = sfence
        %s200 = sand.u32 %s30, 1
        %s201 = scalar_lea.sflag [#allocation4], %s200
        %s202 = sand.u32 %s30, 1
        %s203 = smul.addr %s202, 8
        %s204 = scalar_lea.vmem [#allocation3], %s203
        %p205 = pneg %p43
        %p206 = pneg %p40
        %p207 = pneg %p64
        %p208 = pneg %p61
        %p209 = pneg %p85
        %p210 = pneg %p82
        %p211 = pneg %p111
        %p212 = pneg %p108
        %s213 = sand.u32 %s98, 1
        %s214 = scalar_lea.sflag [#allocation5], %s213
        %s215 = sand.u32 %s98, 1
        %s216 = smul.addr %s215, 2
        %s217 = scalar_lea.vmem [#allocation10], %s216
        %218 = vst [vmem:[#allocation2] sm:$0xf] 0.0
        %219 = vst [vmem:[#allocation2 + $0xc] sm:$0xf] 0.0
        %v220 = vld [vmem:[%s183] sm:$0xff]
        %221 = vst [vmem:[#allocation2 + $0x4] sm:$0xff] %v220
        %s222 = sld [smem:[#allocation9]]
        %s223 = sld [smem:[#allocation9 + $0x1]]
        %v224 = vlaneseq
        %v225 = vand.u32 %v224, 127
        %v226 = vadd.s32 %v225, 128
        %vm227 = vcmp.lt.s32.totalorder %v225, 0
        %v228 = vsub.s32 0, %v225
        %v229 = vsel %vm227, %v228, %v225
        %v230 = vshrl.u32 %v229, 4
        %v231 = vand.u32 %v229, 15
        %v232 = vsub.s32 0, %v231
        %v233 = vsel %vm227, %v232, %v231
        %vm234 = vcmp.lt.s32.totalorder %v226, 0
        %v235 = vsub.s32 0, %v226
        %v236 = vsel %vm234, %v235, %v226
        %v237 = vshrl.u32 %v236, 4
        %v238 = vand.u32 %v236, 15
        %v239 = vsub.s32 0, %v238
        %v240 = vsel %vm234, %v239, %v238
        %vm241 = vcmp.ne.s32.totalorder %v233, 0
        %vm242 = vcmp.ne.s32.totalorder %v240, 0
        %vm243 = vcmp.lt.s32.totalorder %v233, 0
        %vm244 = vcmp.lt.s32.totalorder %v240, 0
        %vm245 = vmand %vm243, %vm241
        %vm246 = vmand %vm244, %vm242
        %v247 = vadd.s32 %v233, 16
        %v248 = vadd.s32 %v240, 16
        %v249 = vsel %vm245, %v247, %v233
        %v250 = vsel %vm246, %v248, %v240
        %v251 = vld [vmem:[#allocation2] sm:$0xff]
        %v252 = vld [vmem:[#allocation2 + $0x8] sm:$0xf]
        %v253 = vld [vmem:[#allocation7] sm:$0xf]
        %255 = vset.pattern.permute.xlu0 0
        %256 = vperm.xlu0 %255, %v253
        %v257 = vpop.permute.xlu0 %256
        %261 = vst [vmem:[#allocation1] ss:$2 sm:$0xff] %v251
        %s262 = scalar_lea.vmem [#allocation1], 16
        %263 = vst [vmem:[%s262] ss:$2 sm:$0xff] %v252
        %v264 = vld.sshfl [vmem:[#allocation1] sm:$0xff pattern:$0x75316420]
        %v265 = vld.sshfl [vmem:[#allocation1 + $0x8] sm:$0xff pattern:$0x75316420]
        %v266 = vld.sshfl [vmem:[#allocation1 + $0x10] sm:$0xff pattern:$0x75316420]
        %267 = vrot.lane.b32.xlu0 %v264, 17
        %v268 = vpop.permute.xlu0 %267
        %269 = vrot.lane.b32.xlu0 %v265, 17
        %v270 = vpop.permute.xlu0 %269
        %271 = vrot.lane.b32.xlu0 %v266, 17
        %v272 = vpop.permute.xlu0 %271
        %vm273 = vcmask 138240
        %v274 = vsel %vm273, %v268, %v270
        %v275 = vsel %vm273, %v270, %v272
        %v278 = vmul.f32 %v257, %v274
        %v279 = vmul.f32 %v257, %v275
        %v280 = vadd.f32 %v278, 0.0
        %v281 = vadd.f32 %v279, 0.0
        %v282 = vld [vmem:[#allocation2] sm:$0xff]
        %v283 = vld [vmem:[#allocation2 + $0x8] sm:$0xf]
        %v284 = vld [vmem:[#allocation7] sm:$0xf]
        %286 = vset.pattern.permute.xlu0 3
        %287 = vperm.xlu0 %286, %v284
        %v288 = vpop.permute.xlu0 %287
        %292 = vst [vmem:[#allocation1] ss:$2 sm:$0xff] %v282
        %s293 = scalar_lea.vmem [#allocation1], 16
        %294 = vst [vmem:[%s293] ss:$2 sm:$0xff] %v283
        %v295 = vld.sshfl [vmem:[#allocation1] sm:$0xff pattern:$0x75316420]
        %v296 = vld.sshfl [vmem:[#allocation1 + $0x8] sm:$0xff pattern:$0x75316420]
        %v297 = vld.sshfl [vmem:[#allocation1 + $0x10] sm:$0xff pattern:$0x75316420]
        %298 = vrot.lane.b32.xlu0 %v295, 1
        %v299 = vpop.permute.xlu0 %298
        %300 = vrot.lane.b32.xlu0 %v296, 1
        %v301 = vpop.permute.xlu0 %300
        %302 = vrot.lane.b32.xlu0 %v297, 1
        %v303 = vpop.permute.xlu0 %302
        %vm304 = vcmask 7168
        %v305 = vsel %vm304, %v299, %v301
        %v306 = vsel %vm304, %v301, %v303
        %v309 = vmul.f32 %v288, %v305
        %v310 = vmul.f32 %v288, %v306
        %v311 = vadd.f32 %v280, %v309
        %v312 = vadd.f32 %v281, %v310
        %v313 = vld [vmem:[#allocation2 + $0x4] sm:$0xff]
        %v314 = vld [vmem:[#allocation2 + $0xc] sm:$0xf]
        %v315 = vld [vmem:[#allocation7] sm:$0xf]
        %317 = vset.pattern.permute.xlu0 6
        %318 = vperm.xlu0 %317, %v315
        %v319 = vpop.permute.xlu0 %318
        %323 = vst [vmem:[#allocation1] ss:$2 sm:$0xff] %v313
        %s324 = scalar_lea.vmem [#allocation1], 16
        %325 = vst [vmem:[%s324] ss:$2 sm:$0xff] %v314
        %v326 = vld.sshfl [vmem:[#allocation1] sm:$0xff pattern:$0x75316420]
        %v327 = vld.sshfl [vmem:[#allocation1 + $0x8] sm:$0xff pattern:$0x75316420]
        %v328 = vld.sshfl [vmem:[#allocation1 + $0x10] sm:$0xff pattern:$0x75316420]
        %329 = vrot.lane.b32.xlu0 %v326, 113
        %v330 = vpop.permute.xlu0 %329
        %331 = vrot.lane.b32.xlu0 %v327, 113
        %v332 = vpop.permute.xlu0 %331
        %333 = vrot.lane.b32.xlu0 %v328, 113
        %v334 = vpop.permute.xlu0 %333
        %vm335 = vcmask 924672
        %v336 = vsel %vm335, %v330, %v332
        %v337 = vsel %vm335, %v332, %v334
        %v340 = vmul.f32 %v319, %v336
        %v341 = vmul.f32 %v319, %v337
        %v342 = vadd.f32 %v311, %v340
        %v343 = vadd.f32 %v312, %v341
        %v344 = vadd.s32 %v249, 4294967295
        %v345 = vadd.s32 %v250, 4294967295
        %vm346 = vcmp.ge.s32.totalorder %v344, 0
        %vm347 = vcmp.ge.s32.totalorder %v345, 0
        %vm348 = vcmp.lt.s32.totalorder %v344, 16
        %vm349 = vcmp.lt.s32.totalorder %v345, 16
        %vm350 = vmand %vm346, %vm348
        %vm351 = vmand %vm347, %vm349
        %v352 = vsel %vm350, 1, 0
        %v353 = vsel %vm351, 1, 0
        %v354 = vcvt.s32.f32 %v352
        %v355 = vcvt.s32.f32 %v353
        %v356 = vmul.f32 %v342, %v354
        %v357 = vmul.f32 %v343, %v355
        %v358 = vadd.f32 %v356, 0.0
        %v359 = vadd.f32 %v357, 0.0
        %v360 = vld [vmem:[#allocation2] sm:$0xff]
        %v361 = vld [vmem:[#allocation2 + $0x8] sm:$0xf]
        %v362 = vld [vmem:[#allocation7] sm:$0xf]
        %364 = vset.pattern.permute.xlu0 1
        %365 = vperm.xlu0 %364, %v362
        %v366 = vpop.permute.xlu0 %365
        %370 = vst [vmem:[#allocation1] ss:$2 sm:$0xff] %v360
        %s371 = scalar_lea.vmem [#allocation1], 16
        %372 = vst [vmem:[%s371] ss:$2 sm:$0xff] %v361
        %v373 = vld.sshfl [vmem:[#allocation1] sm:$0xff pattern:$0x75316420]
        %v374 = vld.sshfl [vmem:[#allocation1 + $0x8] sm:$0xff pattern:$0x75316420]
        %v375 = vld.sshfl [vmem:[#allocation1 + $0x10] sm:$0xff pattern:$0x75316420]
        %376 = vrot.lane.b32.xlu0 %v373, 16
        %v377 = vpop.permute.xlu0 %376
        %378 = vrot.lane.b32.xlu0 %v374, 16
        %v379 = vpop.permute.xlu0 %378
        %380 = vrot.lane.b32.xlu0 %v375, 16
        %v381 = vpop.permute.xlu0 %380
        %vm382 = vcmask 130048
        %v383 = vsel %vm382, %v377, %v379
        %v384 = vsel %vm382, %v379, %v381
        %v387 = vmul.f32 %v366, %v383
        %v388 = vmul.f32 %v366, %v384
        %v389 = vadd.f32 %v387, 0.0
        %v390 = vadd.f32 %v388, 0.0
        %v391 = vld [vmem:[#allocation2 + $0x4] sm:$0xff]
        %v392 = vld [vmem:[#allocation7] sm:$0xf]
        %394 = vset.pattern.permute.xlu0 4
        %395 = vperm.xlu0 %394, %v392
        %v396 = vpop.permute.xlu0 %395
        %399 = vst [vmem:[#allocation1] ss:$2 sm:$0xff] %v391
        %v400 = vld.sshfl [vmem:[#allocation1] sm:$0xff pattern:$0x75316420]
        %v401 = vld.sshfl [vmem:[#allocation1 + $0x8] sm:$0xff pattern:$0x75316420]
        %v404 = vmul.f32 %v396, %v400
        %v405 = vmul.f32 %v396, %v401
        %v406 = vadd.f32 %v389, %v404
        %v407 = vadd.f32 %v390, %v405
        %v408 = vld [vmem:[#allocation2 + $0x4] sm:$0xff]
        %v409 = vld [vmem:[#allocation2 + $0xc] sm:$0xf]
        %v410 = vld [vmem:[#allocation7] sm:$0xf]
        %412 = vset.pattern.permute.xlu0 7
        %413 = vperm.xlu0 %412, %v410
        %v414 = vpop.permute.xlu0 %413
        %418 = vst [vmem:[#allocation1] ss:$2 sm:$0xff] %v408
        %s419 = scalar_lea.vmem [#allocation1], 16
        %420 = vst [vmem:[%s419] ss:$2 sm:$0xff] %v409
        %v421 = vld.sshfl [vmem:[#allocation1] sm:$0xff pattern:$0x75316420]
        %v422 = vld.sshfl [vmem:[#allocation1 + $0x8] sm:$0xff pattern:$0x75316420]
        %v423 = vld.sshfl [vmem:[#allocation1 + $0x10] sm:$0xff pattern:$0x75316420]
        %424 = vrot.lane.b32.xlu0 %v421, 112
        %v425 = vpop.permute.xlu0 %424
        %426 = vrot.lane.b32.xlu0 %v422, 112
        %v427 = vpop.permute.xlu0 %426
        %428 = vrot.lane.b32.xlu0 %v423, 112
        %v429 = vpop.permute.xlu0 %428
        %vm430 = vcmask 916480
        %v431 = vsel %vm430, %v425, %v427
        %v432 = vsel %vm430, %v427, %v429
        %v435 = vmul.f32 %v414, %v431
        %v436 = vmul.f32 %v414, %v432
        %v437 = vadd.f32 %v406, %v435
        %v438 = vadd.f32 %v407, %v436
        %v439 = vadd.f32 %v358, %v437
        %v440 = vadd.f32 %v359, %v438
        %v441 = vld [vmem:[#allocation2] sm:$0xff]
        %v442 = vld [vmem:[#allocation2 + $0x8] sm:$0xf]
        %v443 = vld [vmem:[#allocation7] sm:$0xf]
        %445 = vset.pattern.permute.xlu0 2
        %446 = vperm.xlu0 %445, %v443
        %v447 = vpop.permute.xlu0 %446
        %451 = vst [vmem:[#allocation1] ss:$2 sm:$0xff] %v441
        %s452 = scalar_lea.vmem [#allocation1], 16
        %453 = vst [vmem:[%s452] ss:$2 sm:$0xff] %v442
        %v454 = vld.sshfl [vmem:[#allocation1] sm:$0xff pattern:$0x75316420]
        %v455 = vld.sshfl [vmem:[#allocation1 + $0x8] sm:$0xff pattern:$0x75316420]
        %v456 = vld.sshfl [vmem:[#allocation1 + $0x10] sm:$0xff pattern:$0x75316420]
        %457 = vrot.lane.b32.xlu0 %v454, 15
        %v458 = vpop.permute.xlu0 %457
        %459 = vrot.lane.b32.xlu0 %v455, 15
        %v460 = vpop.permute.xlu0 %459
        %461 = vrot.lane.b32.xlu0 %v456, 15
        %v462 = vpop.permute.xlu0 %461
        %vm463 = vcmask 121856
        %v464 = vsel %vm463, %v458, %v460
        %v465 = vsel %vm463, %v460, %v462
        %v468 = vmul.f32 %v447, %v464
        %v469 = vmul.f32 %v447, %v465
        %v470 = vadd.f32 %v468, 0.0
        %v471 = vadd.f32 %v469, 0.0
        %v472 = vld [vmem:[#allocation2 + $0x4] sm:$0xff]
        %v473 = vld [vmem:[#allocation2 + $0xc] sm:$0xf]
        %v474 = vld [vmem:[#allocation7] sm:$0xf]
        %476 = vset.pattern.permute.xlu0 5
        %477 = vperm.xlu0 %476, %v474
        %v478 = vpop.permute.xlu0 %477
        %482 = vst [vmem:[#allocation1] ss:$2 sm:$0xff] %v472
        %s483 = scalar_lea.vmem [#allocation1], 16
        %484 = vst [vmem:[%s483] ss:$2 sm:$0xff] %v473
        %v485 = vld.sshfl [vmem:[#allocation1] sm:$0xff pattern:$0x75316420]
        %v486 = vld.sshfl [vmem:[#allocation1 + $0x8] sm:$0xff pattern:$0x75316420]
        %v487 = vld.sshfl [vmem:[#allocation1 + $0x10] sm:$0xff pattern:$0x75316420]
        %488 = vrot.lane.b32.xlu0 %v485, 127
        %v489 = vpop.permute.xlu0 %488
        %490 = vrot.lane.b32.xlu0 %v486, 127
        %v491 = vpop.permute.xlu0 %490
        %492 = vrot.lane.b32.xlu0 %v487, 127
        %v493 = vpop.permute.xlu0 %492
        %vm494 = vcmask 1039360
        %v495 = vsel %vm494, %v489, %v491
        %v496 = vsel %vm494, %v491, %v493
        %v499 = vmul.f32 %v478, %v495
        %v500 = vmul.f32 %v478, %v496
        %v501 = vadd.f32 %v470, %v499
        %v502 = vadd.f32 %v471, %v500
        %v503 = vld [vmem:[#allocation2 + $0x4] sm:$0xff]
        %v504 = vld [vmem:[#allocation2 + $0xc] sm:$0xf]
        %v505 = vld [vmem:[#allocation7] sm:$0xf]
        %507 = vset.pattern.permute.xlu0 8
        %508 = vperm.xlu0 %507, %v505
        %v509 = vpop.permute.xlu0 %508
        %513 = vst [vmem:[#allocation1] ss:$2 sm:$0xff] %v503
        %s514 = scalar_lea.vmem [#allocation1], 16
        %515 = vst [vmem:[%s514] ss:$2 sm:$0xff] %v504
        %v516 = vld.sshfl [vmem:[#allocation1] sm:$0xff pattern:$0x75316420]
        %v517 = vld.sshfl [vmem:[#allocation1 + $0x8] sm:$0xff pattern:$0x75316420]
        %v518 = vld.sshfl [vmem:[#allocation1 + $0x10] sm:$0xff pattern:$0x75316420]
        %519 = vrot.lane.b32.xlu0 %v516, 111
        %v520 = vpop.permute.xlu0 %519
        %521 = vrot.lane.b32.xlu0 %v517, 111
        %v522 = vpop.permute.xlu0 %521
        %523 = vrot.lane.b32.xlu0 %v518, 111
        %v524 = vpop.permute.xlu0 %523
        %vm525 = vcmask 908288
        %v526 = vsel %vm525, %v520, %v522
        %v527 = vsel %vm525, %v522, %v524
        %v530 = vmul.f32 %v509, %v526
        %v531 = vmul.f32 %v509, %v527
        %v532 = vadd.f32 %v501, %v530
        %v533 = vadd.f32 %v502, %v531
        %v534 = vadd.s32 %v249, 1
        %v535 = vadd.s32 %v250, 1
        %vm536 = vcmp.ge.s32.totalorder %v534, 0
        %vm537 = vcmp.ge.s32.totalorder %v535, 0
        %vm538 = vcmp.lt.s32.totalorder %v534, 16
        %vm539 = vcmp.lt.s32.totalorder %v535, 16
        %vm540 = vmand %vm536, %vm538
        %vm541 = vmand %vm537, %vm539
        %v542 = vsel %vm540, 1, 0
        %v543 = vsel %vm541, 1, 0
        %v544 = vcvt.s32.f32 %v542
        %v545 = vcvt.s32.f32 %v543
        %v546 = vmul.f32 %v532, %v544
        %v547 = vmul.f32 %v533, %v545
        %v548 = vadd.f32 %v439, %v546
        %v549 = vadd.f32 %v440, %v547
        %vm550 = vcmask 1043456
        %v551 = vsel %vm550, %v548, 0.0
        %v552 = vrot.slane %v551, 4
        %v553 = vadd.f32 %v551, %v552
        %v554 = vrot.slane %v553, 2
        %v555 = vadd.f32 %v553, %v554
        %v556 = vrot.slane %v555, 1
        %v557 = vadd.f32 %v555, %v556
        %v558 = vsel %vm550, %v549, 0.0
        %v559 = vrot.slane %v558, 4
        %v560 = vadd.f32 %v558, %v559
        %v561 = vrot.slane %v560, 2
        %v562 = vadd.f32 %v560, %v561
        %v563 = vrot.slane %v562, 1
        %v564 = vadd.f32 %v562, %v563
        %v565 = vstv %s222
        %v566 = vadd.f32 %v557, %v565
        %v567 = vadd.f32 %v564, %v565
        %vm568 = vcmp.ge.f32.partialorder %v566, 0.0
        %vm569 = vcmp.ge.f32.partialorder %v567, 0.0
        %v570 = vstv %s223
        %v571 = vmul.f32 %v570, %v566
        %v572 = vmul.f32 %v570, %v567
        %v573 = vsel %vm568, %v566, %v571
        %v574 = vsel %vm569, %v567, %v572
        %v577 = vrot.slane %v574, 7
        %vm578 = vcmask 1040384
        %v579 = vsel %vm578, %v573, %v577
        %v581 = vlaneseq
        %vm582 = vcmp.ge.s32.totalorder %v581, 0
        %vm583 = vcmp.lt.s32.totalorder %v581, 256
        %vm584 = vmand %vm582, %vm583
        %585 = vst.msk [vmem:[%s217] sm:$0x3] %vm584, %v579
        %s586 = sand.u32 %s98, 1
        %s587 = scalar_lea.sflag [#allocation5], %s586
        %s588 = sand.u32 %s98, 1
        %s589 = smul.addr %s588, 2
        %s590 = scalar_lea.vmem [#allocation10], %s589
        // Predicated region
        $region45: #{tpu_custom_call.1} parent=31 // pred_check
          %p591 = pneg %p108
        $region46: #{tpu_custom_call.1} parent=31 // pred_check_branch
          %593 = sbr.rel (%p591) target = $region48
        $region47: #{tpu_custom_call.1} parent=31 // pred_region
          %595 = vsyncadd %s587, 0
          %s596 = smul.addr %s22, 2
          %s597 = scalar_lea.hbm %s3, %s596
          %s599 = sshll.u32 %s590, 4
          %s600 = int_to_ptr.vmem [resolvable:$true] %s599
          %s601 = sshll.u32 %s597, 4
          %s602 = int_to_ptr.hbm [resolvable:$true] %s601
          %604 = dma.vmem_to_hbm [thread:$0]  %s600, 32, %s602, %s587
        $region48: #{tpu_custom_call.1} parent=31 // pred_fallthru
          _
      $region32: #{tpu_custom_call.1} parent=5 // pred_fallthru
        _
      %p605 = scmp.le.s32.totalorder 2, %s17
      // Predicated region
      $region49: #{tpu_custom_call.1} parent=5 // pred_check
        %p606 = pneg %p605
      $region50: #{tpu_custom_call.1} parent=5 // pred_check_branch
        %608 = sbr.rel (%p606) target = $region52
      $region51: #{tpu_custom_call.1} parent=5 // pred_region
        %s609 = ssub.s32 %s17, 2
        // Predicated region
        $region53: #{tpu_custom_call.1} parent=51 // pred_check
          %p610 = pneg %p114
        $region54: #{tpu_custom_call.1} parent=51 // pred_check_branch
          %612 = sbr.rel (%p610) target = $region56
        $region55: #{tpu_custom_call.1} parent=51 // pred_region
          %s613 = sand.u32 %s99, 1
          %s614 = scalar_lea.sflag [#allocation5], %s613
          %s615 = sand.u32 %s99, 1
          %s616 = smul.addr %s615, 2
          %s617 = scalar_lea.vmem [#allocation10], %s616
          %619 = dma.done %s614, 32
        $region56: #{tpu_custom_call.1} parent=51 // pred_fallthru
          _
      $region52: #{tpu_custom_call.1} parent=5 // pred_fallthru
        _
    $region6: #{tpu_custom_call.1} parent=1 // loop_footer
      %s21 = sadd.s32 1, %s17
    $region7: #{tpu_custom_call.1} parent=1 // loop_footer_branch
      %16 = sbr.rel target = $region3
    $region8: #{tpu_custom_call.1} parent=1 // loop_exit
      _
    %620 = vsyncpa [#allocation4], 1
    %s621 = scalar_lea.sflag [#allocation4], 1
    %622 = vsyncpa %s621, 1
    %623 = vsyncpa [#allocation8], 1
    %624 = vsyncpa [#allocation5], 1
    %s625 = scalar_lea.sflag [#allocation5], 1
    %626 = vsyncpa %s625, 1
    %627 = vsyncpa [#allocation6], 1
    %s628 = scalar_lea.sflag [#allocation6], 1
    %629 = vsyncpa %s628, 1

</llo_original>
